<compile_context>
chip_gen: v7x
topology: tpu7x:2x2x1
jax: 0.10.0
libtpu: 0.0.40
codegen_flags: <defaults>
</compile_context>

<pallas_src>
import numpy as np
import jax
import jax.numpy as jnp
from jax.experimental import pallas as pl
from jax.experimental.pallas import tpu as pltpu


def _torch_like_gaussian_1d(kernel_size, sigma):
    """1-D marginals gx (over H, kh taps) and gy (over W, kw taps) whose outer
    product equals GaussianBlur._get_gaussian_kernel2d (incl. its asymmetric
    linspace endpoints: linspace(-k//2, k//2, k) with (-k)//2 floor division)."""
    kh, kw = kernel_size
    kx = np.linspace(-kh // 2, kh // 2, kh, dtype=np.float64)
    ky = np.linspace(-kw // 2, kw // 2, kw, dtype=np.float64)
    gx = np.exp(-(kx ** 2) / (2.0 * float(sigma) ** 2))
    gy = np.exp(-(ky ** 2) / (2.0 * float(sigma) ** 2))
    gx = gx / gx.sum()
    gy = gy / gy.sum()
    return gx.astype(np.float32), gy.astype(np.float32)


def _choose_planes_per_block(n_planes, h, w, kh, kw, itemsize, budget_bytes):
    """Largest divisor of n_planes whose per-step VMEM footprint fits the
    budget; prefer leaving grid >= 2 so v7x megacore can shard the grid."""
    hp, wp = h + kh - 1, w + kw - 1

    def est(p):
        io = 2 * 2 * p * h * w * itemsize            # in + out blocks, double buffered
        scratch = p * hp * wp * 4                    # f32 padded scratch
        interm = p * h * wp * 4 + p * h * w * 4      # vertical-pass value + output value
        return io + scratch + interm

    divisors = [d for d in range(1, n_planes + 1) if n_planes % d == 0]
    fits = [d for d in divisors if est(d) <= budget_bytes] or [1]
    pref = [d for d in fits if n_planes // d >= 2]
    return max(pref) if pref else max(fits)


def _make_blur_kernel(gx, gy, p, h, w, ph, pw):
    """Build the kernel body with the (small, static) tap weights and block
    shapes closed over as compile-time constants."""
    kh, kw = len(gx), len(gy)
    hp, wp = h + 2 * ph, w + 2 * pw
    gx = [float(v) for v in gx]
    gy = [float(v) for v in gy]

    def blur_kernel(x_ref, o_ref, pad_ref):
        # x_ref  : (p, h, w)   raw (unpadded) input planes, caller dtype
        # o_ref  : (p, h, w)   output planes, caller dtype
        # pad_ref: (p, hp, wp) f32 VMEM scratch holding zero-padded planes

        # Zero only the border strips; the interior is fully overwritten.
        if ph > 0:
            pad_ref[:, 0:ph, :] = jnp.zeros((p, ph, wp), jnp.float32)
            pad_ref[:, ph + h:hp, :] = jnp.zeros((p, ph, wp), jnp.float32)
        if pw > 0:
            pad_ref[:, :, 0:pw] = jnp.zeros((p, hp, pw), jnp.float32)
            pad_ref[:, :, pw + w:wp] = jnp.zeros((p, hp, pw), jnp.float32)
        pad_ref[:, ph:ph + h, pw:pw + w] = x_ref[...].astype(jnp.float32)

        # Vertical pass (kh taps, sublane-shifted slices) -> (p, h, wp).
        vert = gx[0] * pad_ref[:, 0:h, :]
        for di in range(1, kh):
            vert = vert + gx[di] * pad_ref[:, di:di + h, :]

        # Horizontal pass (kw taps, lane-shifted slices) -> (p, h, w).
        out = gy[0] * vert[:, :, 0:w]
        for dj in range(1, kw):
            out = out + gy[dj] * vert[:, :, dj:dj + w]

        o_ref[...] = out.astype(o_ref.dtype)

    return blur_kernel


def gaussian_blur(x, kernel_size=(3, 3), sigma=1.0):
    """Pallas TPU implementation of GaussianBlur((kh, kw), sigma).forward(x).

    x: (B, C, H, W). Returns (B, C, H, W), same dtype as x.
    """
    if x.ndim != 4:
        raise ValueError(f"Invalid input shape, we expect BxCxHxW. Got: {x.shape}")
    kh, kw = kernel_size
    if kh < 1 or kw < 1 or kh % 2 == 0 or kw % 2 == 0:
        raise ValueError(
            f"kernel_size must be odd (torch module's .view only holds for odd "
            f"sizes). Got: {kernel_size}")

    b, c, h, w = x.shape
    ph, pw = (kh - 1) // 2, (kw - 1) // 2
    hp, wp = h + 2 * ph, w + 2 * pw
    n_planes = b * c

    gx, gy = _torch_like_gaussian_1d(kernel_size, sigma)

    itemsize = jnp.dtype(x.dtype).itemsize
    p = _choose_planes_per_block(n_planes, h, w, kh, kw, itemsize,
                                 budget_bytes=24 << 20)

    x_flat = x.reshape(n_planes, h, w)
    kernel_fn = _make_blur_kernel(gx, gy, p, h, w, ph, pw)

    out_flat = pl.pallas_call(
        kernel_fn,
        out_shape=jax.ShapeDtypeStruct((n_planes, h, w), x.dtype),
        grid_spec=pltpu.PrefetchScalarGridSpec(
            num_scalar_prefetch=0,
            grid=(n_planes // p,),
            in_specs=[pl.BlockSpec((p, h, w), lambda i: (i, 0, 0))],
            out_specs=pl.BlockSpec((p, h, w), lambda i: (i, 0, 0)),
            scratch_shapes=[pltpu.VMEM((p, hp, wp), jnp.float32)],
        ),
        compiler_params=pltpu.CompilerParams(
            dimension_semantics=("parallel",),
            vmem_limit_bytes=48 * 1024 * 1024,
        ),
    )(x_flat)

    return out_flat.reshape(b, c, h, w)


def _reference_blur(x, kernel_size=(3, 3), sigma=1.0):
    """Pure-JAX reference: same math as F.conv2d with the torch-built 2-D kernel."""
    b, c, h, w = x.shape
    kh, kw = kernel_size
    ph, pw = (kh - 1) // 2, (kw - 1) // 2
    kx = np.linspace(-kh // 2, kh // 2, kh, dtype=np.float32)
    ky = np.linspace(-kw // 2, kw // 2, kw, dtype=np.float32)
    kxg, kyg = np.meshgrid(kx, ky, indexing="ij")
    kern = np.exp(-(kxg ** 2 + kyg ** 2) / (2.0 * float(sigma) ** 2))
    kern = (kern / kern.sum()).astype(np.float32)
    xf = x.reshape(b * c, h, w).astype(jnp.float32)
    xp = jnp.pad(xf, ((0, 0), (ph, ph), (pw, pw)))
    acc = jnp.zeros_like(xf)
    for di in range(kh):
        for dj in range(kw):
            acc = acc + float(kern[di, dj]) * xp[:, di:di + h, dj:dj + w]
    return acc.reshape(b, c, h, w).astype(x.dtype)


if __name__ == "__main__":
    key = jax.random.PRNGKey(0)
    B, C, H, W = 2, 4, 16, 16
    x = jax.random.uniform(key, (B, C, H, W), dtype=jnp.float32)

    # 3x3 blur (the module's canonical configuration).
    out = gaussian_blur(x, kernel_size=(3, 3), sigma=1.0)
    out = jax.block_until_ready(out)
    ref = _reference_blur(x, kernel_size=(3, 3), sigma=1.0)
    assert out.shape == (B, C, H, W), out.shape
    np_out, np_ref = np.asarray(out), np.asarray(ref)
    assert np.allclose(np_out, np_ref, atol=1e-5, rtol=1e-5), \
        np.max(np.abs(np_out - np_ref))

    # 5x5 blur exercises the separable multi-tap path.
    out5 = jax.block_until_ready(gaussian_blur(x, kernel_size=(5, 5), sigma=1.5))
    ref5 = _reference_blur(x, kernel_size=(5, 5), sigma=1.5)
    assert np.allclose(np.asarray(out5), np.asarray(ref5), atol=1e-5, rtol=1e-5), \
        np.max(np.abs(np.asarray(out5) - np.asarray(ref5)))

    print("KERNEL_OK")
</pallas_src>

<mosaic_0001>
module attributes {stable_mosaic.version = 11 : i64} {
  func.func @blur_kernel(%arg0: i32, %arg1: memref<4x16x16xf32, #tpu.memory_space<vmem>>, %arg2: memref<4x16x16xf32, #tpu.memory_space<vmem>>, %arg3: memref<4x18x18xf32, #tpu.memory_space<vmem>>) attributes {dimension_semantics = [#tpu.dimension_semantics<parallel>], iteration_bounds = array<i64: 2>, scalar_prefetch = 0 : i64, scratch_operands = 1 : i64, tpu.core_type = #tpu.core_type<tc>, window_params = [{transform_indices = @transform_0, window_bounds = array<i64: 4, 16, 16>}, {transform_indices = @transform_1, window_bounds = array<i64: 4, 16, 16>}]} {
    %cst = arith.constant 0.000000e+00 : f32
    %0 = vector.broadcast %cst : f32 to vector<4x1x18xf32>
    %c0 = arith.constant 0 : index
    %c0_0 = arith.constant 0 : index
    %c0_1 = arith.constant 0 : index
    %1 = vector.load %arg3[%c0, %c0_0, %c0_1] : memref<4x18x18xf32, #tpu.memory_space<vmem>>, vector<4x1x18xf32>
    tpu.vector_store %arg3[%c0, %c0_0, %c0_1], %0 {strides = array<i32>} : memref<4x18x18xf32, #tpu.memory_space<vmem>>, vector<4x1x18xf32>,
    %cst_2 = arith.constant 0.000000e+00 : f32
    %2 = vector.broadcast %cst_2 : f32 to vector<4x1x18xf32>
    %c0_3 = arith.constant 0 : index
    %c17 = arith.constant 17 : index
    %c0_4 = arith.constant 0 : index
    %3 = vector.load %arg3[%c0_3, %c17, %c0_4] : memref<4x18x18xf32, #tpu.memory_space<vmem>>, vector<4x1x18xf32>
    tpu.vector_store %arg3[%c0_3, %c17, %c0_4], %2 {strides = array<i32>} : memref<4x18x18xf32, #tpu.memory_space<vmem>>, vector<4x1x18xf32>,
    %cst_5 = arith.constant 0.000000e+00 : f32
    %4 = vector.broadcast %cst_5 : f32 to vector<4x18x1xf32>
    %c0_6 = arith.constant 0 : index
    %c0_7 = arith.constant 0 : index
    %c0_8 = arith.constant 0 : index
    %5 = vector.load %arg3[%c0_6, %c0_7, %c0_8] : memref<4x18x18xf32, #tpu.memory_space<vmem>>, vector<4x18x1xf32>
    tpu.vector_store %arg3[%c0_6, %c0_7, %c0_8], %4 {strides = array<i32>} : memref<4x18x18xf32, #tpu.memory_space<vmem>>, vector<4x18x1xf32>,
    %cst_9 = arith.constant 0.000000e+00 : f32
    %6 = vector.broadcast %cst_9 : f32 to vector<4x18x1xf32>
    %c0_10 = arith.constant 0 : index
    %c0_11 = arith.constant 0 : index
    %c17_12 = arith.constant 17 : index
    %7 = vector.load %arg3[%c0_10, %c0_11, %c17_12] : memref<4x18x18xf32, #tpu.memory_space<vmem>>, vector<4x18x1xf32>
    tpu.vector_store %arg3[%c0_10, %c0_11, %c17_12], %6 {strides = array<i32>} : memref<4x18x18xf32, #tpu.memory_space<vmem>>, vector<4x18x1xf32>,
    %c0_13 = arith.constant 0 : index
    %c0_14 = arith.constant 0 : index
    %c0_15 = arith.constant 0 : index
    %8 = vector.load %arg1[%c0_13, %c0_14, %c0_15] : memref<4x16x16xf32, #tpu.memory_space<vmem>>, vector<4x16x16xf32>
    %c0_16 = arith.constant 0 : index
    %c1 = arith.constant 1 : index
    %c1_17 = arith.constant 1 : index
    %9 = vector.load %arg3[%c0_16, %c1, %c1_17] : memref<4x18x18xf32, #tpu.memory_space<vmem>>, vector<4x16x16xf32>
    tpu.vector_store %arg3[%c0_16, %c1, %c1_17], %8 {strides = array<i32>} : memref<4x18x18xf32, #tpu.memory_space<vmem>>, vector<4x16x16xf32>,
    %c0_18 = arith.constant 0 : index
    %c0_19 = arith.constant 0 : index
    %c0_20 = arith.constant 0 : index
    %10 = vector.load %arg3[%c0_18, %c0_19, %c0_20] : memref<4x18x18xf32, #tpu.memory_space<vmem>>, vector<4x16x18xf32>
    %cst_21 = arith.constant 0.0833159163 : f32
    %11 = vector.broadcast %cst_21 : f32 to vector<4x16x18xf32>
    %12 = arith.mulf %11, %10 : vector<4x16x18xf32>
    %c0_22 = arith.constant 0 : index
    %c1_23 = arith.constant 1 : index
    %c0_24 = arith.constant 0 : index
    %13 = vector.load %arg3[%c0_22, %c1_23, %c0_24] : memref<4x18x18xf32, #tpu.memory_space<vmem>>, vector<4x16x18xf32>
    %cst_25 = arith.constant 0.543288052 : f32
    %14 = vector.broadcast %cst_25 : f32 to vector<4x16x18xf32>
    %15 = arith.mulf %14, %13 : vector<4x16x18xf32>
    %16 = arith.addf %12, %15 : vector<4x16x18xf32>
    %c0_26 = arith.constant 0 : index
    %c2 = arith.constant 2 : index
    %c0_27 = arith.constant 0 : index
    %17 = vector.load %arg3[%c0_26, %c2, %c0_27] : memref<4x18x18xf32, #tpu.memory_space<vmem>>, vector<4x16x18xf32>
    %cst_28 = arith.constant 0.373396039 : f32
    %18 = vector.broadcast %cst_28 : f32 to vector<4x16x18xf32>
    %19 = arith.mulf %18, %17 : vector<4x16x18xf32>
    %20 = arith.addf %16, %19 : vector<4x16x18xf32>
    %21 = vector.extract_strided_slice %20 {offsets = [0, 0, 0], sizes = [4, 16, 16], strides = [1, 1, 1]} : vector<4x16x18xf32> to vector<4x16x16xf32>
    %cst_29 = arith.constant 0.0833159163 : f32
    %22 = vector.broadcast %cst_29 : f32 to vector<4x16x16xf32>
    %23 = arith.mulf %22, %21 : vector<4x16x16xf32>
    %24 = vector.extract_strided_slice %20 {offsets = [0, 0, 1], sizes = [4, 16, 16], strides = [1, 1, 1]} : vector<4x16x18xf32> to vector<4x16x16xf32>
    %cst_30 = arith.constant 0.543288052 : f32
    %25 = vector.broadcast %cst_30 : f32 to vector<4x16x16xf32>
    %26 = arith.mulf %25, %24 : vector<4x16x16xf32>
    %27 = arith.addf %23, %26 : vector<4x16x16xf32>
    %28 = vector.extract_strided_slice %20 {offsets = [0, 0, 2], sizes = [4, 16, 16], strides = [1, 1, 1]} : vector<4x16x18xf32> to vector<4x16x16xf32>
    %cst_31 = arith.constant 0.373396039 : f32
    %29 = vector.broadcast %cst_31 : f32 to vector<4x16x16xf32>
    %30 = arith.mulf %29, %28 : vector<4x16x16xf32>
    %31 = arith.addf %27, %30 : vector<4x16x16xf32>
    %c0_32 = arith.constant 0 : index
    %c0_33 = arith.constant 0 : index
    %c0_34 = arith.constant 0 : index
    %32 = vector.load %arg2[%c0_32, %c0_33, %c0_34] : memref<4x16x16xf32, #tpu.memory_space<vmem>>, vector<4x16x16xf32>
    tpu.vector_store %arg2[%c0_32, %c0_33, %c0_34], %31 {strides = array<i32>} : memref<4x16x16xf32, #tpu.memory_space<vmem>>, vector<4x16x16xf32>,
    return
  }
  func.func @transform_0(%arg0: i32) -> (i32, i32, i32) {
    %c0_i32 = arith.constant 0 : i32
    %c0_i32_0 = arith.constant 0 : i32
    %c0_i32_1 = arith.constant 0 : i32
    return %arg0, %c0_i32, %c0_i32_0 : i32, i32, i32
  }
  func.func @transform_1(%arg0: i32) -> (i32, i32, i32) {
    %c0_i32 = arith.constant 0 : i32
    %c0_i32_0 = arith.constant 0 : i32
    %c0_i32_1 = arith.constant 0 : i32
    return %arg0, %c0_i32, %c0_i32_0 : i32, i32, i32
  }
}

</mosaic_0001>

<llo_original>
// kernel: tpu_custom_call.1
$region0: #{tpu_custom_call.1}
  #allocation0 [shape = 'u32[]', space=smem, size = 0x4, offset = 0x4, fixed_abs, tag = 'smem constant byte address 0x4 - core index']
  #allocation1 [shape = 'u32[144,128]{1,0:T(1,128)}', space=vmem, size = 0x12000, scoped, tag = 'internal scratch']
  #allocation2 [shape = 'f32[4,18,18]{2,1,0:T(8,128)}', space=vmem, size = 0xc000, scoped, tag = 'scratch operand']
  %s0 = inlined_call_operand.hbm [shape: f32[8,16,16], index: 0, kind: input, shape index: {}]
  %s1 = inlined_call_operand.hbm [shape: f32[8,16,16], index: 1, kind: output, shape index: {}]
  %s2 = sld [smem:[#allocation0]]
  $region41: #{tpu_custom_call.1} parent=0
    _
  %s4 = ssub.s32 1, %s2
  %s5 = scalar_select 0, %s4, %s2
  $region1: #{tpu_custom_call.1} parent=0
    #allocation3 [shape = 'u8[65536]{0}', space=vmem, size = 0x10000, scoped, tag = 'input window, operand 0']
    #allocation4 [shape = 's32[2]{0}', space=sflag, size = 0x8, scoped, tag = 'scoped memory for tpu_custom_call.1']
    #allocation5 [shape = 's32[2]{0}', space=sflag, size = 0x8, scoped, tag = 'scoped memory for tpu_custom_call.1']
    #allocation6 [shape = 'u8[65536]{0}', space=vmem, size = 0x10000, scoped, tag = 'output window, operand 0']
    %6 = vsyncpa [#allocation4], 0
    %s7 = scalar_lea.sflag [#allocation4], 1
    %8 = vsyncpa %s7, 0
    %9 = vsyncpa [#allocation5], 0
    %s10 = scalar_lea.sflag [#allocation5], 1
    %11 = vsyncpa %s10, 0
    loop: start=0, step=1, limit=4
    $region2: #{tpu_custom_call.1} parent=1 // loop_pre_header
      _
    $region3: #{tpu_custom_call.1} parent=1 // loop_header
      %s13 = sphi 0, %s17
      %p14 = scmp.ge.s32.totalorder %s13, 4
      %s23 = sphi 0, %s25
      %s26 = sphi 0, %s23
      %s27 = sphi 0, %s26
      %s43 = sphi 0, %s27
      %s49 = sphi 0, %s51
      %s52 = sphi 0, %s49
      %s53 = sphi 0, %s52
      %s69 = sphi 0, %s53
    $region4: #{tpu_custom_call.1} parent=1 // loop_header_branch
      %16 = sbr.rel (%p14) target = $region8
    $region5: #{tpu_custom_call.1} parent=1 // loop_body
      %s18 = ssub.s32 %s13, 1
      %s19 = ssub.s32 %s13, 2
      %s20 = sadd.s32 %s13, 1
      %s21 = ssub.s32 %s13, %s20
      %p22 = scmp.eq.s32.totalorder %s21, 0
      %s24 = sadd.s32 %s23, 1
      %s25 = scalar_select %p22, %s23, %s24
      %p28 = pneg %p22
      %p29 = scmp.eq.s32.totalorder %s13, 1
      %p30 = por %p28, %p29
      %p31 = scmp.ne.s32.totalorder %s23, %s26
      %p32 = scmp.eq.s32.totalorder %s13, 0
      %p33 = por %p31, %p32
      %p34 = scmp.ne.s32.totalorder %s23, %s26
      %p35 = scmp.eq.s32.totalorder %s18, 1
      %p36 = por %p34, %p35
      %p37 = scmp.ne.s32.totalorder %s26, %s27
      %p38 = scmp.eq.s32.totalorder %s18, 0
      %p39 = por %p37, %p38
      %p40 = scmp.ne.s32.totalorder %s26, %s27
      %p41 = scmp.eq.s32.totalorder %s19, 1
      %p42 = por %p40, %p41
      %p44 = scmp.ne.s32.totalorder %s27, %s43
      %p45 = scmp.eq.s32.totalorder %s19, 0
      %p46 = por %p44, %p45
      %s47 = ssub.s32 %s13, %s20
      %p48 = scmp.eq.s32.totalorder %s47, 0
      %s50 = sadd.s32 %s49, 1
      %s51 = scalar_select %p48, %s49, %s50
      %p54 = pneg %p48
      %p55 = scmp.eq.s32.totalorder %s13, 1
      %p56 = por %p54, %p55
      %p57 = scmp.ne.s32.totalorder %s49, %s52
      %p58 = scmp.eq.s32.totalorder %s13, 0
      %p59 = por %p57, %p58
      %p60 = scmp.ne.s32.totalorder %s49, %s52
      %p61 = scmp.eq.s32.totalorder %s18, 1
      %p62 = por %p60, %p61
      %p63 = scmp.ne.s32.totalorder %s52, %s53
      %p64 = scmp.eq.s32.totalorder %s18, 0
      %p65 = por %p63, %p64
      %p66 = scmp.ne.s32.totalorder %s52, %s53
      %p67 = scmp.eq.s32.totalorder %s19, 1
      %p68 = por %p66, %p67
      %p70 = scmp.ne.s32.totalorder %s53, %s69
      %p71 = scmp.eq.s32.totalorder %s19, 0
      %p72 = por %p70, %p71
      %p73 = scmp.le.s32.totalorder 1, %s13
      %p74 = scmp.lt.s32.totalorder %s13, 3
      %p75 = pnand %p73, %p74
      %p76 = pneg %p75
      // Predicated region
      $region9: #{tpu_custom_call.1} parent=5 // pred_check
        _
      $region10: #{tpu_custom_call.1} parent=5 // pred_check_branch
        %78 = sbr.rel (%p75) target = $region12
      $region11: #{tpu_custom_call.1} parent=5 // pred_region
        %s79 = ssub.s32 %s13, 1
      $region12: #{tpu_custom_call.1} parent=5 // pred_fallthru
        _
      %p80 = scmp.lt.s32.totalorder %s13, 2
      // Predicated region
      $region13: #{tpu_custom_call.1} parent=5 // pred_check
        %p81 = pneg %p80
      $region14: #{tpu_custom_call.1} parent=5 // pred_check_branch
        %83 = sbr.rel (%p81) target = $region16
      $region15: #{tpu_custom_call.1} parent=5 // pred_region
        // Predicated region
        $region17: #{tpu_custom_call.1} parent=15 // pred_check
          %p84 = pneg %p33
        $region18: #{tpu_custom_call.1} parent=15 // pred_check_branch
          %86 = sbr.rel (%p84) target = $region20
        $region19: #{tpu_custom_call.1} parent=15 // pred_region
          %s87 = sand.u32 %s23, 1
          %s88 = scalar_lea.sflag [#allocation4], %s87
          %s89 = sand.u32 %s23, 1
          %s90 = smul.addr %s89, 64
          %s91 = scalar_lea.vmem [#allocation3], %s90
          %s92 = smul.u32 4, %s13
          %s94 = ssub.s32 1024, 1024
          %95 = vsyncadd %s88, %s94
          %s96 = smul.addr %s92, 2
          %s97 = smul.addr %s96, 128
          %s98 = scalar_lea.hbm %s0, %s97
          %s99 = sshll.u32 %s91, 4
          %s100 = int_to_ptr.vmem [resolvable:$true] %s99
          %105 = dma.hbm_to_vmem [thread:$0]  %s98, 1024, %s100, %s88, 128, 128, 8
        $region20: #{tpu_custom_call.1} parent=15 // pred_fallthru
          _
      $region16: #{tpu_custom_call.1} parent=5 // pred_fallthru
        _
      %p106 = scmp.le.s32.totalorder 1, %s13
      %p107 = scmp.lt.s32.totalorder %s13, 3
      %p108 = pnand %p106, %p107
      %p109 = pneg %p108
      // Predicated region
      $region21: #{tpu_custom_call.1} parent=5 // pred_check
        _
      $region22: #{tpu_custom_call.1} parent=5 // pred_check_branch
        %111 = sbr.rel (%p108) target = $region24
      $region23: #{tpu_custom_call.1} parent=5 // pred_region
        %s112 = ssub.s32 %s13, 1
        %s113 = sand.u32 %s26, 1
        %s114 = scalar_lea.sflag [#allocation4], %s113
        %s115 = sand.u32 %s26, 1
        %s116 = smul.addr %s115, 64
        %s117 = scalar_lea.vmem [#allocation3], %s116
        // Predicated region
        $region25: #{tpu_custom_call.1} parent=23 // pred_check
          %p118 = pneg %p39
        $region26: #{tpu_custom_call.1} parent=23 // pred_check_branch
          %120 = sbr.rel (%p118) target = $region28
        $region27: #{tpu_custom_call.1} parent=23 // pred_region
          %121 = dma.done %s114, 1024
        $region28: #{tpu_custom_call.1} parent=23 // pred_fallthru
          _
        %s122 = sand.u32 %s26, 1
        %s123 = scalar_lea.sflag [#allocation4], %s122
        %s124 = sand.u32 %s26, 1
        %s125 = smul.addr %s124, 64
        %s126 = scalar_lea.vmem [#allocation3], %s125
        %p127 = pneg %p39
        %p128 = pneg %p36
        %p129 = pneg %p65
        %p130 = pneg %p62
        %s131 = sand.u32 %s52, 1
        %s132 = scalar_lea.sflag [#allocation5], %s131
        %s133 = sand.u32 %s52, 1
        %s134 = smul.addr %s133, 64
        %s135 = scalar_lea.vmem [#allocation6], %s134
        %s136 = smul.u32 4, %s18
        %s137 = smul.u32 4, %s18
        %vm138 = vcmask 139264
        %139 = vst.msk [vmem:[#allocation2] sm:$0x1] %vm138, 0.0
        %140 = vst.msk [vmem:[#allocation2 + $0x18] sm:$0x1] %vm138, 0.0
        %141 = vst.msk [vmem:[#allocation2 + $0x30] sm:$0x1] %vm138, 0.0
        %142 = vst.msk [vmem:[#allocation2 + $0x48] sm:$0x1] %vm138, 0.0
        %143 = vst.msk [vmem:[#allocation2 + $0x11] sm:$0x1] %vm138, 0.0
        %144 = vst.msk [vmem:[#allocation2 + $0x29] sm:$0x1] %vm138, 0.0
        %145 = vst.msk [vmem:[#allocation2 + $0x41] sm:$0x1] %vm138, 0.0
        %146 = vst.msk [vmem:[#allocation2 + $0x59] sm:$0x1] %vm138, 0.0
        %vm147 = vcmask 7168
        %148 = vst.msk [vmem:[#allocation2] sm:$0xff] %vm147, 0.0
        %149 = vst.msk [vmem:[#allocation2 + $0x8] sm:$0xff] %vm147, 0.0
        %vm150 = vcmask 1024
        %151 = vst.msk [vmem:[#allocation2 + $0x10] sm:$0x3] %vm150, 0.0
        %152 = vst.msk [vmem:[#allocation2 + $0x18] sm:$0xff] %vm147, 0.0
        %153 = vst.msk [vmem:[#allocation2 + $0x20] sm:$0xff] %vm147, 0.0
        %154 = vst.msk [vmem:[#allocation2 + $0x28] sm:$0x3] %vm150, 0.0
        %155 = vst.msk [vmem:[#allocation2 + $0x30] sm:$0xff] %vm147, 0.0
        %156 = vst.msk [vmem:[#allocation2 + $0x38] sm:$0xff] %vm147, 0.0
        %157 = vst.msk [vmem:[#allocation2 + $0x40] sm:$0x3] %vm150, 0.0
        %158 = vst.msk [vmem:[#allocation2 + $0x48] sm:$0xff] %vm147, 0.0
        %159 = vst.msk [vmem:[#allocation2 + $0x50] sm:$0xff] %vm147, 0.0
        %160 = vst.msk [vmem:[#allocation2 + $0x58] sm:$0x3] %vm150, 0.0
        %vm161 = vcmask 146568
        %162 = vst.msk [vmem:[#allocation2] sm:$0xff] %vm161, 0.0
        %163 = vst.msk [vmem:[#allocation2 + $0x8] sm:$0xff] %vm161, 0.0
        %vm164 = vcmask 140424
        %165 = vst.msk [vmem:[#allocation2 + $0x10] sm:$0x3] %vm164, 0.0
        %166 = vst.msk [vmem:[#allocation2 + $0x18] sm:$0xff] %vm161, 0.0
        %167 = vst.msk [vmem:[#allocation2 + $0x20] sm:$0xff] %vm161, 0.0
        %168 = vst.msk [vmem:[#allocation2 + $0x28] sm:$0x3] %vm164, 0.0
        %169 = vst.msk [vmem:[#allocation2 + $0x30] sm:$0xff] %vm161, 0.0
        %170 = vst.msk [vmem:[#allocation2 + $0x38] sm:$0xff] %vm161, 0.0
        %171 = vst.msk [vmem:[#allocation2 + $0x40] sm:$0x3] %vm164, 0.0
        %172 = vst.msk [vmem:[#allocation2 + $0x48] sm:$0xff] %vm161, 0.0
        %173 = vst.msk [vmem:[#allocation2 + $0x50] sm:$0xff] %vm161, 0.0
        %174 = vst.msk [vmem:[#allocation2 + $0x58] sm:$0x3] %vm164, 0.0
        %v175 = vld [vmem:[%s117] sm:$0xff]
        %v176 = vld [vmem:[%s117 + $0x8] sm:$0xff]
        %v177 = vld [vmem:[%s117 + $0x10] sm:$0xff]
        %v178 = vld [vmem:[%s117 + $0x18] sm:$0xff]
        %v179 = vld [vmem:[%s117 + $0x20] sm:$0xff]
        %v180 = vld [vmem:[%s117 + $0x28] sm:$0xff]
        %v181 = vld [vmem:[%s117 + $0x30] sm:$0xff]
        %v182 = vld [vmem:[%s117 + $0x38] sm:$0xff]
        %191 = vrot.lane.b32.xlu0 %v175, 1
        %v192 = vpop.permute.xlu0 %191
        %193 = vrot.lane.b32.xlu0 %v176, 1
        %v194 = vpop.permute.xlu0 %193
        %195 = vrot.lane.b32.xlu0 %v177, 1
        %v196 = vpop.permute.xlu0 %195
        %197 = vrot.lane.b32.xlu0 %v178, 1
        %v198 = vpop.permute.xlu0 %197
        %199 = vrot.lane.b32.xlu0 %v179, 1
        %v200 = vpop.permute.xlu0 %199
        %201 = vrot.lane.b32.xlu0 %v180, 1
        %v202 = vpop.permute.xlu0 %201
        %203 = vrot.lane.b32.xlu0 %v181, 1
        %v204 = vpop.permute.xlu0 %203
        %205 = vrot.lane.b32.xlu0 %v182, 1
        %v206 = vpop.permute.xlu0 %205
        %vm215 = vcmask 138248
        %216 = vst.msk [vmem:[#allocation2 + $0x1] sm:$0xff] %vm215, %v192
        %217 = vst.msk [vmem:[#allocation2 + $0x9] sm:$0xff] %vm215, %v194
        %218 = vst.msk [vmem:[#allocation2 + $0x19] sm:$0xff] %vm215, %v196
        %219 = vst.msk [vmem:[#allocation2 + $0x21] sm:$0xff] %vm215, %v198
        %220 = vst.msk [vmem:[#allocation2 + $0x31] sm:$0xff] %vm215, %v200
        %221 = vst.msk [vmem:[#allocation2 + $0x39] sm:$0xff] %vm215, %v202
        %222 = vst.msk [vmem:[#allocation2 + $0x49] sm:$0xff] %vm215, %v204
        %223 = vst.msk [vmem:[#allocation2 + $0x51] sm:$0xff] %vm215, %v206
        %v224 = vld [vmem:[#allocation2] sm:$0xff]
        %v225 = vld [vmem:[#allocation2 + $0x8] sm:$0xff]
        %v226 = vld [vmem:[#allocation2 + $0x18] sm:$0xff]
        %v227 = vld [vmem:[#allocation2 + $0x20] sm:$0xff]
        %v228 = vld [vmem:[#allocation2 + $0x30] sm:$0xff]
        %v229 = vld [vmem:[#allocation2 + $0x38] sm:$0xff]
        %v230 = vld [vmem:[#allocation2 + $0x48] sm:$0xff]
        %v231 = vld [vmem:[#allocation2 + $0x50] sm:$0xff]
        %v232 = vmul.f32 %v224, 0.08331592
        %v233 = vmul.f32 %v225, 0.08331592
        %v234 = vmul.f32 %v226, 0.08331592
        %v235 = vmul.f32 %v227, 0.08331592
        %v236 = vmul.f32 %v228, 0.08331592
        %v237 = vmul.f32 %v229, 0.08331592
        %v238 = vmul.f32 %v230, 0.08331592
        %v239 = vmul.f32 %v231, 0.08331592
        %v240 = vld [vmem:[#allocation2 + $0x1] sm:$0xff]
        %v241 = vld [vmem:[#allocation2 + $0x9] sm:$0xff]
        %v242 = vld [vmem:[#allocation2 + $0x19] sm:$0xff]
        %v243 = vld [vmem:[#allocation2 + $0x21] sm:$0xff]
        %v244 = vld [vmem:[#allocation2 + $0x31] sm:$0xff]
        %v245 = vld [vmem:[#allocation2 + $0x39] sm:$0xff]
        %v246 = vld [vmem:[#allocation2 + $0x49] sm:$0xff]
        %v247 = vld [vmem:[#allocation2 + $0x51] sm:$0xff]
        %v248 = vmul.f32 %v240, 0.54328805
        %v249 = vmul.f32 %v241, 0.54328805
        %v250 = vmul.f32 %v242, 0.54328805
        %v251 = vmul.f32 %v243, 0.54328805
        %v252 = vmul.f32 %v244, 0.54328805
        %v253 = vmul.f32 %v245, 0.54328805
        %v254 = vmul.f32 %v246, 0.54328805
        %v255 = vmul.f32 %v247, 0.54328805
        %v256 = vadd.f32 %v232, %v248
        %v257 = vadd.f32 %v233, %v249
        %v258 = vadd.f32 %v234, %v250
        %v259 = vadd.f32 %v235, %v251
        %v260 = vadd.f32 %v236, %v252
        %v261 = vadd.f32 %v237, %v253
        %v262 = vadd.f32 %v238, %v254
        %v263 = vadd.f32 %v239, %v255
        %v264 = vld [vmem:[#allocation2 + $0x2] sm:$0xff]
        %v265 = vld [vmem:[#allocation2 + $0xa] sm:$0xff]
        %v266 = vld [vmem:[#allocation2 + $0x1a] sm:$0xff]
        %v267 = vld [vmem:[#allocation2 + $0x22] sm:$0xff]
        %v268 = vld [vmem:[#allocation2 + $0x32] sm:$0xff]
        %v269 = vld [vmem:[#allocation2 + $0x3a] sm:$0xff]
        %v270 = vld [vmem:[#allocation2 + $0x4a] sm:$0xff]
        %v271 = vld [vmem:[#allocation2 + $0x52] sm:$0xff]
        %v272 = vmul.f32 %v264, 0.37339604
        %v273 = vmul.f32 %v265, 0.37339604
        %v274 = vmul.f32 %v266, 0.37339604
        %v275 = vmul.f32 %v267, 0.37339604
        %v276 = vmul.f32 %v268, 0.37339604
        %v277 = vmul.f32 %v269, 0.37339604
        %v278 = vmul.f32 %v270, 0.37339604
        %v279 = vmul.f32 %v271, 0.37339604
        %v280 = vadd.f32 %v256, %v272
        %v281 = vadd.f32 %v257, %v273
        %v282 = vadd.f32 %v258, %v274
        %v283 = vadd.f32 %v259, %v275
        %v284 = vadd.f32 %v260, %v276
        %v285 = vadd.f32 %v261, %v277
        %v286 = vadd.f32 %v262, %v278
        %v287 = vadd.f32 %v263, %v279
        %v288 = vmul.f32 %v280, 0.08331592
        %v289 = vmul.f32 %v281, 0.08331592
        %v290 = vmul.f32 %v282, 0.08331592
        %v291 = vmul.f32 %v283, 0.08331592
        %v292 = vmul.f32 %v284, 0.08331592
        %v293 = vmul.f32 %v285, 0.08331592
        %v294 = vmul.f32 %v286, 0.08331592
        %v295 = vmul.f32 %v287, 0.08331592
        %v296 = vmul.f32 %v280, 0.54328805
        %v297 = vmul.f32 %v281, 0.54328805
        %v298 = vmul.f32 %v282, 0.54328805
        %v299 = vmul.f32 %v283, 0.54328805
        %v300 = vmul.f32 %v284, 0.54328805
        %v301 = vmul.f32 %v285, 0.54328805
        %v302 = vmul.f32 %v286, 0.54328805
        %v303 = vmul.f32 %v287, 0.54328805
        %312 = vrot.lane.b32.xlu0 %v296, 127
        %v313 = vpop.permute.xlu0 %312
        %314 = vrot.lane.b32.xlu0 %v297, 127
        %v315 = vpop.permute.xlu0 %314
        %316 = vrot.lane.b32.xlu0 %v298, 127
        %v317 = vpop.permute.xlu0 %316
        %318 = vrot.lane.b32.xlu0 %v299, 127
        %v319 = vpop.permute.xlu0 %318
        %320 = vrot.lane.b32.xlu0 %v300, 127
        %v321 = vpop.permute.xlu0 %320
        %322 = vrot.lane.b32.xlu0 %v301, 127
        %v323 = vpop.permute.xlu0 %322
        %324 = vrot.lane.b32.xlu0 %v302, 127
        %v325 = vpop.permute.xlu0 %324
        %326 = vrot.lane.b32.xlu0 %v303, 127
        %v327 = vpop.permute.xlu0 %326
        %v336 = vadd.f32 %v288, %v313
        %v337 = vadd.f32 %v289, %v315
        %v338 = vadd.f32 %v290, %v317
        %v339 = vadd.f32 %v291, %v319
        %v340 = vadd.f32 %v292, %v321
        %v341 = vadd.f32 %v293, %v323
        %v342 = vadd.f32 %v294, %v325
        %v343 = vadd.f32 %v295, %v327
        %v344 = vmul.f32 %v280, 0.37339604
        %v345 = vmul.f32 %v281, 0.37339604
        %v346 = vmul.f32 %v282, 0.37339604
        %v347 = vmul.f32 %v283, 0.37339604
        %v348 = vmul.f32 %v284, 0.37339604
        %v349 = vmul.f32 %v285, 0.37339604
        %v350 = vmul.f32 %v286, 0.37339604
        %v351 = vmul.f32 %v287, 0.37339604
        %360 = vrot.lane.b32.xlu0 %v344, 126
        %v361 = vpop.permute.xlu0 %360
        %362 = vrot.lane.b32.xlu0 %v345, 126
        %v363 = vpop.permute.xlu0 %362
        %364 = vrot.lane.b32.xlu0 %v346, 126
        %v365 = vpop.permute.xlu0 %364
        %366 = vrot.lane.b32.xlu0 %v347, 126
        %v367 = vpop.permute.xlu0 %366
        %368 = vrot.lane.b32.xlu0 %v348, 126
        %v369 = vpop.permute.xlu0 %368
        %370 = vrot.lane.b32.xlu0 %v349, 126
        %v371 = vpop.permute.xlu0 %370
        %372 = vrot.lane.b32.xlu0 %v350, 126
        %v373 = vpop.permute.xlu0 %372
        %374 = vrot.lane.b32.xlu0 %v351, 126
        %v375 = vpop.permute.xlu0 %374
        %v384 = vadd.f32 %v336, %v361
        %v385 = vadd.f32 %v337, %v363
        %v386 = vadd.f32 %v338, %v365
        %v387 = vadd.f32 %v339, %v367
        %v388 = vadd.f32 %v340, %v369
        %v389 = vadd.f32 %v341, %v371
        %v390 = vadd.f32 %v342, %v373
        %v391 = vadd.f32 %v343, %v375
        %vm392 = vcmask 130048
        %393 = vst.msk [vmem:[%s135] sm:$0xff] %vm392, %v384
        %394 = vst.msk [vmem:[%s135 + $0x8] sm:$0xff] %vm392, %v385
        %395 = vst.msk [vmem:[%s135 + $0x10] sm:$0xff] %vm392, %v386
        %396 = vst.msk [vmem:[%s135 + $0x18] sm:$0xff] %vm392, %v387
        %397 = vst.msk [vmem:[%s135 + $0x20] sm:$0xff] %vm392, %v388
        %398 = vst.msk [vmem:[%s135 + $0x28] sm:$0xff] %vm392, %v389
        %399 = vst.msk [vmem:[%s135 + $0x30] sm:$0xff] %vm392, %v390
        %400 = vst.msk [vmem:[%s135 + $0x38] sm:$0xff] %vm392, %v391
        %s401 = sand.u32 %s52, 1
        %s402 = scalar_lea.sflag [#allocation5], %s401
        %s403 = sand.u32 %s52, 1
        %s404 = smul.addr %s403, 64
        %s405 = scalar_lea.vmem [#allocation6], %s404
        // Predicated region
        $region29: #{tpu_custom_call.1} parent=23 // pred_check
          %p406 = pneg %p62
        $region30: #{tpu_custom_call.1} parent=23 // pred_check_branch
          %408 = sbr.rel (%p406) target = $region32
        $region31: #{tpu_custom_call.1} parent=23 // pred_region
          %s409 = smul.u32 4, %s18
          %s411 = ssub.s32 1024, 1024
          %412 = vsyncadd %s402, %s411
          %s413 = smul.addr %s409, 2
          %s414 = smul.addr %s413, 128
          %s415 = scalar_lea.hbm %s1, %s414
          %s416 = sshll.u32 %s405, 4
          %s417 = int_to_ptr.vmem [resolvable:$true] %s416
          %422 = dma.vmem_to_hbm [thread:$0]  %s417, 1024, %s415, %s402, 128, 128, 8
        $region32: #{tpu_custom_call.1} parent=23 // pred_fallthru
          _
      $region24: #{tpu_custom_call.1} parent=5 // pred_fallthru
        _
      %p423 = scmp.le.s32.totalorder 2, %s13
      // Predicated region
      $region33: #{tpu_custom_call.1} parent=5 // pred_check
        %p424 = pneg %p423
      $region34: #{tpu_custom_call.1} parent=5 // pred_check_branch
        %426 = sbr.rel (%p424) target = $region36
      $region35: #{tpu_custom_call.1} parent=5 // pred_region
        %s427 = ssub.s32 %s13, 2
        // Predicated region
        $region37: #{tpu_custom_call.1} parent=35 // pred_check
          %p428 = pneg %p68
        $region38: #{tpu_custom_call.1} parent=35 // pred_check_branch
          %430 = sbr.rel (%p428) target = $region40
        $region39: #{tpu_custom_call.1} parent=35 // pred_region
          %s431 = sand.u32 %s53, 1
          %s432 = scalar_lea.sflag [#allocation5], %s431
          %s433 = sand.u32 %s53, 1
          %s434 = smul.addr %s433, 64
          %s435 = scalar_lea.vmem [#allocation6], %s434
          %436 = dma.done %s432, 1024
        $region40: #{tpu_custom_call.1} parent=35 // pred_fallthru
          _
      $region36: #{tpu_custom_call.1} parent=5 // pred_fallthru
        _
    $region6: #{tpu_custom_call.1} parent=1 // loop_footer
      %s17 = sadd.s32 1, %s13
    $region7: #{tpu_custom_call.1} parent=1 // loop_footer_branch
      %12 = sbr.rel target = $region3
    $region8: #{tpu_custom_call.1} parent=1 // loop_exit
      _
    %437 = vsyncpa [#allocation4], 1
    %s438 = scalar_lea.sflag [#allocation4], 1
    %439 = vsyncpa %s438, 1
    %440 = vsyncpa [#allocation5], 1
    %s441 = scalar_lea.sflag [#allocation5], 1
    %442 = vsyncpa %s441, 1

</llo_original>
